<compile_context>
chip_gen: v7x
topology: tpu7x:2x2x1
jax: 0.10.0
libtpu: 0.0.40
codegen_flags: <defaults>
</compile_context>

<pallas_src>
import functools

import jax
import jax.numpy as jnp
from jax.experimental import pallas as pl
from jax.experimental.pallas import tpu as pltpu

_EPS = 1e-12  # matches torch.nn.functional.normalize default eps


def _ocra_head_kernel(x_ref, w_ref, *refs, normalize_x, has_col_scale, scale, mxu_dtype):
    """Fused head tile: (optional) row L2-normalize x, matmul, column-scale, scale.

    x_ref: (TM, D)  VMEM tile
    w_ref: (D, TN)  VMEM tile
    refs:  (col_scale_ref (1, TN),)? + (o_ref (TM, TN),)
    """
    if has_col_scale:
        cs_ref, o_ref = refs
    else:
        (o_ref,) = refs

    x = x_ref[...]
    if normalize_x:
        # F.normalize(x, dim=-1): x / max(||x||, eps) == x * rsqrt(max(sumsq, eps^2)).
        xf = x.astype(jnp.float32)
        sumsq = jnp.sum(xf * xf, axis=-1, keepdims=True)          # XLU reduce
        inv = jax.lax.rsqrt(jnp.maximum(sumsq, _EPS * _EPS))       # EUP slot
        if scale != 1.0:
            inv = inv * scale                                      # fold 10.0 / (1/T)
        x_mm = (xf * inv).astype(mxu_dtype)
    else:
        x_mm = x.astype(mxu_dtype)

    w_mm = w_ref[...].astype(mxu_dtype)
    out = jnp.dot(x_mm, w_mm, preferred_element_type=jnp.float32)  # MXU, f32 acc

    if (not normalize_x) and scale != 1.0:
        out = out * scale
    if has_col_scale:
        # Hoisted per-column inverse L2 norm of the weight: (1, TN) broadcast over rows.
        out = out * cs_ref[...]

    o_ref[...] = out.astype(o_ref.dtype)


def _pick_tile(dim, preferred, align):
    """Largest tile <= preferred that evenly divides dim and respects TPU alignment.

    Falls back to the full dimension (always a legal block shape)."""
    if dim <= preferred:
        return dim
    t = preferred
    while t > align and dim % t != 0:
        t //= 2
    if dim % t == 0 and t % align == 0:
        return t
    return dim


def ocra_head_forward(x, weight_dc, *, use_norm, feat_norm, T=1.0,
                      tm=256, tn=512, mxu_dtype=jnp.bfloat16):
    """Pallas implementation of OcraHead.forward.

    x:         (..., D) float32
    weight_dc: (D, C)   float32  (in_features, out_features layout, as in NormedLinear)
    """
    orig_lead = x.shape[:-1]
    D = x.shape[-1]
    x2 = x.reshape(-1, D)
    N = x2.shape[0]
    D2, C = weight_dc.shape
    assert D == D2, f"feature dim mismatch: {D} vs {D2}"

    if use_norm:
        # NormedLinear: 10 * normalize(x, dim=1) @ normalize(W, dim=0)
        normalize_x, has_col_scale, scale = True, True, 10.0
    elif feat_norm:
        # normalize(x, dim=-1) then plain Linear (no bias)
        normalize_x, has_col_scale, scale = True, False, 1.0
    else:
        # Linear(x) / T
        normalize_x, has_col_scale, scale = False, False, 1.0 / float(T)

    TM = _pick_tile(N, tm, 8)      # sublane-aligned row tile
    TN = _pick_tile(C, tn, 128)    # lane-dense output tile (multiple of 128 when tiled)
    n_i, n_j = N // TM, C // TN

    kernel = functools.partial(
        _ocra_head_kernel,
        normalize_x=normalize_x,
        has_col_scale=has_col_scale,
        scale=float(scale),
        mxu_dtype=mxu_dtype,
    )

    # Choose grid-axis ordering that minimizes HBM re-reads:
    #   rows-outer (j inner): x tile resident across j  -> W re-read n_i times.
    #   cols-outer (i inner): W tile resident across i  -> x re-read n_j times.
    rows_outer = (n_i * D * C) <= (n_j * N * D)
    if rows_outer:
        grid = (n_i, n_j)
        x_map = lambda i, j: (i, 0)
        w_map = lambda i, j: (0, j)
        o_map = lambda i, j: (i, j)
        cs_map = lambda i, j: (0, j)
    else:
        grid = (n_j, n_i)
        x_map = lambda j, i: (i, 0)
        w_map = lambda j, i: (0, j)
        o_map = lambda j, i: (i, j)
        cs_map = lambda j, i: (0, j)

    in_specs = [
        pl.BlockSpec((TM, D), x_map),
        pl.BlockSpec((D, TN), w_map),
    ]
    args = [x2, weight_dc]

    if has_col_scale:
        # Hoist weight-column normalization out of the kernel: computed once per call
        # instead of once per row-tile grid step.
        col_sumsq = jnp.sum(weight_dc.astype(jnp.float32) ** 2, axis=0, keepdims=True)
        inv_col = jax.lax.rsqrt(jnp.maximum(col_sumsq, _EPS * _EPS))  # (1, C)
        in_specs.append(pl.BlockSpec((1, TN), cs_map))
        args.append(inv_col)

    out = pl.pallas_call(
        kernel,
        out_shape=jax.ShapeDtypeStruct((N, C), jnp.float32),
        grid=grid,
        in_specs=in_specs,
        out_specs=pl.BlockSpec((TM, TN), o_map),
        compiler_params=pltpu.CompilerParams(
            dimension_semantics=("parallel", "parallel"),
            vmem_limit_bytes=64 << 20,
        ),
    )(*args)

    return out.reshape(*orig_lead, C)


# ----------------------- parameter initialization (deterministic) ------------

def init_normed_linear_weight(key, in_dim, out_dim):
    """Mimics NormedLinear init: uniform(-1,1), then renorm columns to unit L2."""
    w = jax.random.uniform(key, (in_dim, out_dim), jnp.float32, -1.0, 1.0)
    col_norm = jnp.sqrt(jnp.sum(w * w, axis=0, keepdims=True))
    return w / jnp.maximum(col_norm, _EPS)


def init_linear_weight(key, in_dim, out_dim, std=2.1):
    """Mimics trunc_normal_(std=2.1) on an (out_dim, in_dim) weight; returned as (D, C)."""
    w = std * jax.random.truncated_normal(key, -2.0, 2.0, (out_dim, in_dim), jnp.float32)
    return w.T  # store as (in_dim, out_dim) so the kernel computes x @ w


# --------------------------------- reference ----------------------------------

def _ref_forward(x, w_dc, *, use_norm, feat_norm, T=1.0):
    if use_norm:
        xn = x / jnp.maximum(jnp.linalg.norm(x, axis=1, keepdims=True), _EPS)
        wn = w_dc / jnp.maximum(jnp.linalg.norm(w_dc, axis=0, keepdims=True), _EPS)
        return 10.0 * (xn @ wn)
    elif feat_norm:
        xn = x / jnp.maximum(jnp.linalg.norm(x, axis=-1, keepdims=True), _EPS)
        return xn @ w_dc
    else:
        return (x @ w_dc) / T


if __name__ == "__main__":
    key = jax.random.PRNGKey(0)
    k_x, k_w1, k_w2 = jax.random.split(key, 3)

    # Small but TPU-tile-friendly shapes; tm/tn chosen so the grid is actually 2x2.
    N, in_dim, out_dim = 32, 128, 256
    tm, tn = 16, 128
    x = jax.random.normal(k_x, (N, in_dim), jnp.float32)

    # Mode 1: use_norm=True (NormedLinear, scaled cosine similarity)
    w_normed = init_normed_linear_weight(k_w1, in_dim, out_dim)
    out1 = ocra_head_forward(x, w_normed, use_norm=True, feat_norm=False, tm=tm, tn=tn)
    jax.block_until_ready(out1)
    ref1 = _ref_forward(x, w_normed, use_norm=True, feat_norm=False)

    # Mode 2: use_norm=False, feat_norm=True (normalize features, then Linear)
    w_lin = init_linear_weight(k_w2, in_dim, out_dim)
    out2 = ocra_head_forward(x, w_lin, use_norm=False, feat_norm=True, tm=tm, tn=tn)
    jax.block_until_ready(out2)
    ref2 = _ref_forward(x, w_lin, use_norm=False, feat_norm=True)

    # Mode 3: plain Linear / T
    T = 2.0
    out3 = ocra_head_forward(x, w_lin, use_norm=False, feat_norm=False, T=T, tm=tm, tn=tn)
    jax.block_until_ready(out3)
    ref3 = _ref_forward(x, w_lin, use_norm=False, feat_norm=False, T=T)

    # Loose-ish tolerance: kernel feeds the MXU bf16 operands (f32 accumulation),
    # reference is pure f32.
    assert jnp.allclose(out1, ref1, atol=1e-1, rtol=3e-2), "mode1 mismatch"
    assert jnp.allclose(out2, ref2, atol=1e-1, rtol=3e-2), "mode2 mismatch"
    assert jnp.allclose(out3, ref3, atol=1e-1, rtol=3e-2), "mode3 mismatch"

    print("KERNEL_OK")
</pallas_src>

<mosaic_0001>
module attributes {stable_mosaic.version = 11 : i64} {
  func.func @_ocra_head_kernel(%arg0: i32, %arg1: i32, %arg2: memref<16x128xf32, #tpu.memory_space<vmem>>, %arg3: memref<128x128xf32, #tpu.memory_space<vmem>>, %arg4: memref<1x128xf32, #tpu.memory_space<vmem>>, %arg5: memref<16x128xf32, #tpu.memory_space<vmem>>) attributes {dimension_semantics = [#tpu.dimension_semantics<parallel>, #tpu.dimension_semantics<parallel>], iteration_bounds = array<i64: 2, 2>, scalar_prefetch = 0 : i64, scratch_operands = 0 : i64, tpu.core_type = #tpu.core_type<tc>, window_params = [{transform_indices = @transform_0, window_bounds = array<i64: 16, 128>}, {transform_indices = @transform_1, window_bounds = array<i64: 128, 128>}, {transform_indices = @transform_2, window_bounds = array<i64: 1, 128>}, {transform_indices = @transform_3, window_bounds = array<i64: 16, 128>}]} {
    %c0 = arith.constant 0 : index
    %c0_0 = arith.constant 0 : index
    %0 = vector.load %arg2[%c0, %c0_0] : memref<16x128xf32, #tpu.memory_space<vmem>>, vector<16x128xf32>
    %1 = arith.mulf %0, %0 : vector<16x128xf32>
    %cst = arith.constant dense<0.000000e+00> : vector<16xf32>
    %2 = vector.multi_reduction <add>, %1, %cst [1] : vector<16x128xf32> to vector<16xf32>
    %3 = vector.shape_cast %2 : vector<16xf32> to vector<16x1xf32>
    %cst_1 = arith.constant 1.000000e-24 : f32
    %4 = vector.broadcast %cst_1 : f32 to vector<16x1xf32>
    %5 = arith.maximumf %3, %4 : vector<16x1xf32>
    %6 = math.rsqrt %5 : vector<16x1xf32>
    %cst_2 = arith.constant 1.000000e+01 : f32
    %7 = vector.broadcast %cst_2 : f32 to vector<16x1xf32>
    %8 = arith.mulf %6, %7 : vector<16x1xf32>
    %9 = vector.broadcast %8 : vector<16x1xf32> to vector<16x128xf32>
    %10 = arith.mulf %0, %9 : vector<16x128xf32>
    %11 = arith.truncf %10 : vector<16x128xf32> to vector<16x128xbf16>
    %c0_3 = arith.constant 0 : index
    %c0_4 = arith.constant 0 : index
    %12 = vector.load %arg3[%c0_3, %c0_4] : memref<128x128xf32, #tpu.memory_space<vmem>>, vector<128x128xf32>
    %13 = arith.truncf %12 : vector<128x128xf32> to vector<128x128xbf16>
    %cst_5 = arith.constant dense<0.000000e+00> : vector<16x128xf32>
    %14 = tpu.matmul %11, %13, %cst_5 {dimension_numbers = #tpu.dot_dimension_numbers<[1], [0], [0], [1], [0, 0, 1, 1], [], []>} : vector<16x128xbf16>, vector<128x128xbf16>, vector<16x128xf32> -> vector<16x128xf32>
    %c0_6 = arith.constant 0 : index
    %c0_7 = arith.constant 0 : index
    %15 = vector.load %arg4[%c0_6, %c0_7] : memref<1x128xf32, #tpu.memory_space<vmem>>, vector<1x128xf32>
    %16 = vector.broadcast %15 : vector<1x128xf32> to vector<16x128xf32>
    %17 = arith.mulf %14, %16 : vector<16x128xf32>
    %c0_8 = arith.constant 0 : index
    %c0_9 = arith.constant 0 : index
    %18 = vector.load %arg5[%c0_8, %c0_9] : memref<16x128xf32, #tpu.memory_space<vmem>>, vector<16x128xf32>
    tpu.vector_store %arg5[%c0_8, %c0_9], %17 {strides = array<i32>} : memref<16x128xf32, #tpu.memory_space<vmem>>, vector<16x128xf32>,
    return
  }
  func.func @transform_0(%arg0: i32, %arg1: i32) -> (i32, i32) {
    %c0_i32 = arith.constant 0 : i32
    %c0_i32_0 = arith.constant 0 : i32
    return %arg1, %c0_i32 : i32, i32
  }
  func.func @transform_1(%arg0: i32, %arg1: i32) -> (i32, i32) {
    %c0_i32 = arith.constant 0 : i32
    %c0_i32_0 = arith.constant 0 : i32
    return %c0_i32, %arg0 : i32, i32
  }
  func.func @transform_2(%arg0: i32, %arg1: i32) -> (i32, i32) {
    %c0_i32 = arith.constant 0 : i32
    %c0_i32_0 = arith.constant 0 : i32
    return %c0_i32, %arg0 : i32, i32
  }
  func.func @transform_3(%arg0: i32, %arg1: i32) -> (i32, i32) {
    %c0_i32 = arith.constant 0 : i32
    return %arg1, %arg0 : i32, i32
  }
}

</mosaic_0001>

<llo_original>
// kernel: tpu_custom_call.1
$region0: #{tpu_custom_call.1}
  #allocation0 [shape = 'u32[]', space=smem, size = 0x4, offset = 0x4, fixed_abs, tag = 'smem constant byte address 0x4 - core index']
  #allocation1 [shape = 'u32[144,128]{1,0:T(1,128)}', space=vmem, size = 0x12000, scoped, tag = 'internal scratch']
  %s0 = inlined_call_operand.hbm [shape: f32[32,128], index: 0, kind: input, shape index: {}]
  %s1 = inlined_call_operand.hbm [shape: f32[128,256], index: 1, kind: input, shape index: {}]
  %s2 = inlined_call_operand.hbm [shape: f32[1,256], index: 2, kind: input, shape index: {}]
  %s3 = inlined_call_operand.hbm [shape: f32[32,256], index: 3, kind: output, shape index: {}]
  %s4 = sld [smem:[#allocation0]]
  $region57: #{tpu_custom_call.1} parent=0
    _
  %s6 = ssub.s32 1, %s4
  %s7 = scalar_select 0, %s6, %s4
  $region1: #{tpu_custom_call.1} parent=0
    #allocation2 [shape = 'u8[16384]{0}', space=vmem, size = 0x4000, scoped, tag = 'input window, operand 0']
    #allocation3 [shape = 's32[2]{0}', space=sflag, size = 0x8, scoped, tag = 'scoped memory for tpu_custom_call.1']
    #allocation4 [shape = 's32[2]{0}', space=sflag, size = 0x8, scoped, tag = 'scoped memory for tpu_custom_call.1']
    #allocation5 [shape = 'u8[131072]{0}', space=vmem, size = 0x20000, scoped, tag = 'input window, operand 1']
    #allocation6 [shape = 's32[2]{0}', space=sflag, size = 0x8, scoped, tag = 'scoped memory for tpu_custom_call.1']
    #allocation7 [shape = 'u8[1024]{0}', space=vmem, size = 0x400, scoped, tag = 'input window, operand 2']
    #allocation8 [shape = 'u8[16384]{0}', space=vmem, size = 0x4000, scoped, tag = 'output window, operand 0']
    %8 = vsyncpa [#allocation3], 0
    %s9 = scalar_lea.sflag [#allocation3], 1
    %10 = vsyncpa %s9, 0
    %11 = vsyncpa [#allocation6], 0
    %s12 = scalar_lea.sflag [#allocation6], 1
    %13 = vsyncpa %s12, 0
    %14 = vsyncpa [#allocation4], 0
    %s15 = scalar_lea.sflag [#allocation4], 1
    %16 = vsyncpa %s15, 0
    loop: start=0, step=1, limit=6
    $region2: #{tpu_custom_call.1} parent=1 // loop_pre_header
      _
    $region3: #{tpu_custom_call.1} parent=1 // loop_header
      %s18 = sphi 0, %s22
      %p19 = scmp.ge.s32.totalorder %s18, 6
      %s25 = sphi 0, %s37
      %s26 = sphi 0, %s33
      %s27 = sphi 0, %s25
      %s28 = sphi 0, %s26
      %s29 = sphi 0, %s27
      %s30 = sphi 0, %s28
      %s40 = sphi 0, %s42
      %s43 = sphi 0, %s40
      %s44 = sphi 0, %s43
      %s60 = sphi 0, %s44
      %s66 = sphi 0, %s68
      %s69 = sphi 0, %s66
      %s70 = sphi 0, %s69
      %s86 = sphi 0, %s70
      %s92 = sphi 0, %s94
      %s95 = sphi 0, %s92
      %s96 = sphi 0, %s95
      %s112 = sphi 0, %s96
      %s120 = sphi 0, %s122
      %s123 = sphi 0, %s120
      %s124 = sphi 0, %s123
      %s140 = sphi 0, %s124
    $region4: #{tpu_custom_call.1} parent=1 // loop_header_branch
      %21 = sbr.rel (%p19) target = $region8
    $region5: #{tpu_custom_call.1} parent=1 // loop_body
      %s23 = ssub.s32 %s18, 1
      %s24 = ssub.s32 %s18, 2
      %s31 = sadd.s32 1, %s26
      %p32 = scmp.ge.s32.totalorder %s31, 2
      %s33 = scalar_select %p32, 0, %s31
      %s34 = sadd.s32 1, %s25
      %s35 = scalar_select %p32, %s34, %s25
      %p36 = scmp.ge.s32.totalorder %s35, 2
      %s37 = scalar_select %p36, 0, %s35
      %s38 = ssub.s32 %s26, %s33
      %p39 = scmp.eq.s32.totalorder %s38, 0
      %s41 = sadd.s32 %s40, 1
      %s42 = scalar_select %p39, %s40, %s41
      %p45 = pneg %p39
      %p46 = scmp.eq.s32.totalorder %s18, 3
      %p47 = por %p45, %p46
      %p48 = scmp.ne.s32.totalorder %s40, %s43
      %p49 = scmp.eq.s32.totalorder %s18, 0
      %p50 = por %p48, %p49
      %p51 = scmp.ne.s32.totalorder %s40, %s43
      %p52 = scmp.eq.s32.totalorder %s23, 3
      %p53 = por %p51, %p52
      %p54 = scmp.ne.s32.totalorder %s43, %s44
      %p55 = scmp.eq.s32.totalorder %s23, 0
      %p56 = por %p54, %p55
      %p57 = scmp.ne.s32.totalorder %s43, %s44
      %p58 = scmp.eq.s32.totalorder %s24, 3
      %p59 = por %p57, %p58
      %p61 = scmp.ne.s32.totalorder %s44, %s60
      %p62 = scmp.eq.s32.totalorder %s24, 0
      %p63 = por %p61, %p62
      %s64 = ssub.s32 %s25, %s37
      %p65 = scmp.eq.s32.totalorder %s64, 0
      %s67 = sadd.s32 %s66, 1
      %s68 = scalar_select %p65, %s66, %s67
      %p71 = pneg %p65
      %p72 = scmp.eq.s32.totalorder %s18, 3
      %p73 = por %p71, %p72
      %p74 = scmp.ne.s32.totalorder %s66, %s69
      %p75 = scmp.eq.s32.totalorder %s18, 0
      %p76 = por %p74, %p75
      %p77 = scmp.ne.s32.totalorder %s66, %s69
      %p78 = scmp.eq.s32.totalorder %s23, 3
      %p79 = por %p77, %p78
      %p80 = scmp.ne.s32.totalorder %s69, %s70
      %p81 = scmp.eq.s32.totalorder %s23, 0
      %p82 = por %p80, %p81
      %p83 = scmp.ne.s32.totalorder %s69, %s70
      %p84 = scmp.eq.s32.totalorder %s24, 3
      %p85 = por %p83, %p84
      %p87 = scmp.ne.s32.totalorder %s70, %s86
      %p88 = scmp.eq.s32.totalorder %s24, 0
      %p89 = por %p87, %p88
      %s90 = ssub.s32 %s25, %s37
      %p91 = scmp.eq.s32.totalorder %s90, 0
      %s93 = sadd.s32 %s92, 1
      %s94 = scalar_select %p91, %s92, %s93
      %p97 = pneg %p91
      %p98 = scmp.eq.s32.totalorder %s18, 3
      %p99 = por %p97, %p98
      %p100 = scmp.ne.s32.totalorder %s92, %s95
      %p101 = scmp.eq.s32.totalorder %s18, 0
      %p102 = por %p100, %p101
      %p103 = scmp.ne.s32.totalorder %s92, %s95
      %p104 = scmp.eq.s32.totalorder %s23, 3
      %p105 = por %p103, %p104
      %p106 = scmp.ne.s32.totalorder %s95, %s96
      %p107 = scmp.eq.s32.totalorder %s23, 0
      %p108 = por %p106, %p107
      %p109 = scmp.ne.s32.totalorder %s95, %s96
      %p110 = scmp.eq.s32.totalorder %s24, 3
      %p111 = por %p109, %p110
      %p113 = scmp.ne.s32.totalorder %s96, %s112
      %p114 = scmp.eq.s32.totalorder %s24, 0
      %p115 = por %p113, %p114
      %s116 = ssub.s32 %s26, %s33
      %s117 = ssub.s32 %s25, %s37
      %s118 = sor.u32 %s116, %s117
      %p119 = scmp.eq.s32.totalorder %s118, 0
      %s121 = sadd.s32 %s120, 1
      %s122 = scalar_select %p119, %s120, %s121
      %p125 = pneg %p119
      %p126 = scmp.eq.s32.totalorder %s18, 3
      %p127 = por %p125, %p126
      %p128 = scmp.ne.s32.totalorder %s120, %s123
      %p129 = scmp.eq.s32.totalorder %s18, 0
      %p130 = por %p128, %p129
      %p131 = scmp.ne.s32.totalorder %s120, %s123
      %p132 = scmp.eq.s32.totalorder %s23, 3
      %p133 = por %p131, %p132
      %p134 = scmp.ne.s32.totalorder %s123, %s124
      %p135 = scmp.eq.s32.totalorder %s23, 0
      %p136 = por %p134, %p135
      %p137 = scmp.ne.s32.totalorder %s123, %s124
      %p138 = scmp.eq.s32.totalorder %s24, 3
      %p139 = por %p137, %p138
      %p141 = scmp.ne.s32.totalorder %s124, %s140
      %p142 = scmp.eq.s32.totalorder %s24, 0
      %p143 = por %p141, %p142
      %p144 = scmp.le.s32.totalorder 1, %s18
      %p145 = scmp.lt.s32.totalorder %s18, 5
      %p146 = pnand %p144, %p145
      %p147 = pneg %p146
      // Predicated region
      $region9: #{tpu_custom_call.1} parent=5 // pred_check
        _
      $region10: #{tpu_custom_call.1} parent=5 // pred_check_branch
        %149 = sbr.rel (%p146) target = $region12
      $region11: #{tpu_custom_call.1} parent=5 // pred_region
        %s150 = ssub.s32 %s18, 1
      $region12: #{tpu_custom_call.1} parent=5 // pred_fallthru
        _
      %p151 = scmp.lt.s32.totalorder %s18, 4
      // Predicated region
      $region13: #{tpu_custom_call.1} parent=5 // pred_check
        %p152 = pneg %p151
      $region14: #{tpu_custom_call.1} parent=5 // pred_check_branch
        %154 = sbr.rel (%p152) target = $region16
      $region15: #{tpu_custom_call.1} parent=5 // pred_region
        // Predicated region
        $region17: #{tpu_custom_call.1} parent=15 // pred_check
          %p155 = pneg %p50
        $region18: #{tpu_custom_call.1} parent=15 // pred_check_branch
          %157 = sbr.rel (%p155) target = $region20
        $region19: #{tpu_custom_call.1} parent=15 // pred_region
          %s158 = sand.u32 %s40, 1
          %s159 = scalar_lea.sflag [#allocation3], %s158
          %s160 = sand.u32 %s40, 1
          %s161 = smul.addr %s160, 16
          %s162 = scalar_lea.vmem [#allocation2], %s161
          %s163 = smul.u32 2, %s26
          %s165 = ssub.s32 256, 256
          %166 = vsyncadd %s159, %s165
          %s167 = smul.addr %s163, 128
          %s168 = scalar_lea.hbm %s0, %s167
          %s169 = sshll.u32 %s162, 4
          %s170 = int_to_ptr.vmem [resolvable:$true] %s169
          %175 = dma.hbm_to_vmem [thread:$0]  %s168, 256, %s170, %s159, 128, 128, 8
        $region20: #{tpu_custom_call.1} parent=15 // pred_fallthru
          _
        // Predicated region
        $region21: #{tpu_custom_call.1} parent=15 // pred_check
          %p176 = pneg %p76
        $region22: #{tpu_custom_call.1} parent=15 // pred_check_branch
          %178 = sbr.rel (%p176) target = $region24
        $region23: #{tpu_custom_call.1} parent=15 // pred_region
          %s179 = sand.u32 %s18, 1
          %s180 = scalar_lea.sflag [#allocation6], %s179
          %s181 = sand.u32 %s66, 1
          %s182 = smul.addr %s181, 128
          %s183 = scalar_lea.vmem [#allocation5], %s182
          %s185 = ssub.s32 2048, 2048
          %186 = vsyncadd %s180, %s185
          %s187 = smul.addr %s25, 128
          %s188 = scalar_lea.hbm %s1, %s187
          %s189 = sshll.u32 %s183, 4
          %s190 = int_to_ptr.vmem [resolvable:$true] %s189
          %195 = dma.hbm_to_vmem [thread:$0]  %s188, 2048, %s190, %s180, 256, 128, 8
        $region24: #{tpu_custom_call.1} parent=15 // pred_fallthru
          _
        // Predicated region
        $region25: #{tpu_custom_call.1} parent=15 // pred_check
          %p196 = pneg %p102
        $region26: #{tpu_custom_call.1} parent=15 // pred_check_branch
          %198 = sbr.rel (%p196) target = $region28
        $region27: #{tpu_custom_call.1} parent=15 // pred_region
          %s199 = sand.u32 %s18, 1
          %s200 = scalar_lea.sflag [#allocation6], %s199
          %s201 = sand.u32 %s92, 1
          %s202 = scalar_lea.vmem [#allocation7], %s201
          %s204 = ssub.s32 16, 16
          %205 = vsyncadd %s200, %s204
          %s206 = smul.addr %s25, 16
          %s207 = scalar_lea.hbm %s2, %s206
          %s209 = sshll.u32 %s202, 4
          %s210 = int_to_ptr.vmem [resolvable:$true] %s209
          %212 = dma.hbm_to_vmem [thread:$0]  %s207, 16, %s210, %s200
        $region28: #{tpu_custom_call.1} parent=15 // pred_fallthru
          _
      $region16: #{tpu_custom_call.1} parent=5 // pred_fallthru
        _
      %p213 = scmp.le.s32.totalorder 1, %s18
      %p214 = scmp.lt.s32.totalorder %s18, 5
      %p215 = pnand %p213, %p214
      %p216 = pneg %p215
      // Predicated region
      $region29: #{tpu_custom_call.1} parent=5 // pred_check
        _
      $region30: #{tpu_custom_call.1} parent=5 // pred_check_branch
        %218 = sbr.rel (%p215) target = $region32
      $region31: #{tpu_custom_call.1} parent=5 // pred_region
        %s219 = ssub.s32 %s18, 1
        %s220 = sand.u32 %s43, 1
        %s221 = scalar_lea.sflag [#allocation3], %s220
        %s222 = sand.u32 %s43, 1
        %s223 = smul.addr %s222, 16
        %s224 = scalar_lea.vmem [#allocation2], %s223
        // Predicated region
        $region33: #{tpu_custom_call.1} parent=31 // pred_check
          %p225 = pneg %p56
        $region34: #{tpu_custom_call.1} parent=31 // pred_check_branch
          %227 = sbr.rel (%p225) target = $region36
        $region35: #{tpu_custom_call.1} parent=31 // pred_region
          %228 = dma.done %s221, 256
        $region36: #{tpu_custom_call.1} parent=31 // pred_fallthru
          _
        %s229 = sand.u32 %s23, 1
        %s230 = scalar_lea.sflag [#allocation6], %s229
        %s231 = sand.u32 %s69, 1
        %s232 = smul.addr %s231, 128
        %s233 = scalar_lea.vmem [#allocation5], %s232
        // Predicated region
        $region37: #{tpu_custom_call.1} parent=31 // pred_check
          %p234 = pneg %p82
        $region38: #{tpu_custom_call.1} parent=31 // pred_check_branch
          %236 = sbr.rel (%p234) target = $region40
        $region39: #{tpu_custom_call.1} parent=31 // pred_region
          %237 = dma.done %s230, 2048
        $region40: #{tpu_custom_call.1} parent=31 // pred_fallthru
          _
        %s238 = sand.u32 %s23, 1
        %s239 = scalar_lea.sflag [#allocation6], %s238
        %s240 = sand.u32 %s95, 1
        %s241 = scalar_lea.vmem [#allocation7], %s240
        // Predicated region
        $region41: #{tpu_custom_call.1} parent=31 // pred_check
          %p242 = pneg %p108
        $region42: #{tpu_custom_call.1} parent=31 // pred_check_branch
          %244 = sbr.rel (%p242) target = $region44
        $region43: #{tpu_custom_call.1} parent=31 // pred_region
          %245 = dma.done %s239, 16
        $region44: #{tpu_custom_call.1} parent=31 // pred_fallthru
          _
        %s246 = sand.u32 %s43, 1
        %s247 = scalar_lea.sflag [#allocation3], %s246
        %s248 = sand.u32 %s43, 1
        %s249 = smul.addr %s248, 16
        %s250 = scalar_lea.vmem [#allocation2], %s249
        %p251 = pneg %p56
        %p252 = pneg %p53
        %s253 = sand.u32 %s23, 1
        %s254 = scalar_lea.sflag [#allocation6], %s253
        %s255 = sand.u32 %s69, 1
        %s256 = smul.addr %s255, 128
        %s257 = scalar_lea.vmem [#allocation5], %s256
        %p258 = pneg %p82
        %p259 = pneg %p79
        %s260 = sand.u32 %s23, 1
        %s261 = scalar_lea.sflag [#allocation6], %s260
        %s262 = sand.u32 %s95, 1
        %s263 = scalar_lea.vmem [#allocation7], %s262
        %p264 = pneg %p108
        %p265 = pneg %p105
        %p266 = pneg %p136
        %p267 = pneg %p133
        %s268 = sand.u32 %s123, 1
        %s269 = scalar_lea.sflag [#allocation4], %s268
        %s270 = sand.u32 %s123, 1
        %s271 = smul.addr %s270, 16
        %s272 = scalar_lea.vmem [#allocation8], %s271
        %s273 = smul.u32 2, %s28
        %s274 = smul.u32 2, %s28
        %v276 = vld [vmem:[%s224] sm:$0xff]
        %v277 = vld [vmem:[%s224 + $0x8] sm:$0xff]
        %v278 = vmul.f32 %v276, %v276
        %v279 = vmul.f32 %v277, %v277
        %280 = vadd.xlane.f32.xlu0 %v278
        %v281 = vpop.xlane.xlu0 %280
        %282 = vadd.xlane.f32.xlu0 %v279
        %v283 = vpop.xlane.xlu0 %282
        %v284 = vmax.f32 %v281, 1e-24
        %v285 = vmax.f32 %v283, 1e-24
        %v286 = vrsqrt.pop %v284
        %v287 = vrsqrt.pop %v285
        %v288 = vmul.f32 %v286, 10.0
        %v289 = vmul.f32 %v287, 10.0
        %v290 = vmul.f32 %v276, %v288
        %v291 = vmul.f32 %v277, %v289
        %v292 = vpack.c.bf16 %v291, %v290
        %v293 = vld [vmem:[%s233] sm:$0xff]
        %v294 = vld [vmem:[%s233 + $0x8] sm:$0xff]
        %v295 = vld [vmem:[%s233 + $0x10] sm:$0xff]
        %v296 = vld [vmem:[%s233 + $0x18] sm:$0xff]
        %v297 = vld [vmem:[%s233 + $0x20] sm:$0xff]
        %v298 = vld [vmem:[%s233 + $0x28] sm:$0xff]
        %v299 = vld [vmem:[%s233 + $0x30] sm:$0xff]
        %v300 = vld [vmem:[%s233 + $0x38] sm:$0xff]
        %v301 = vld [vmem:[%s233 + $0x40] sm:$0xff]
        %v302 = vld [vmem:[%s233 + $0x48] sm:$0xff]
        %v303 = vld [vmem:[%s233 + $0x50] sm:$0xff]
        %v304 = vld [vmem:[%s233 + $0x58] sm:$0xff]
        %v305 = vld [vmem:[%s233 + $0x60] sm:$0xff]
        %v306 = vld [vmem:[%s233 + $0x68] sm:$0xff]
        %v307 = vld [vmem:[%s233 + $0x70] sm:$0xff]
        %v308 = vld [vmem:[%s233 + $0x78] sm:$0xff]
        %v309 = vpack.c.bf16 %v294, %v293
        %v310 = vpack.c.bf16 %v296, %v295
        %v311 = vpack.c.bf16 %v298, %v297
        %v312 = vpack.c.bf16 %v300, %v299
        %v313 = vpack.c.bf16 %v302, %v301
        %v314 = vpack.c.bf16 %v304, %v303
        %v315 = vpack.c.bf16 %v306, %v305
        %v316 = vpack.c.bf16 %v308, %v307
        %317 = vmatprep.subr.bf16.mxu0 0
        %318 = vmatpush1.bf16.msra.mxu0 %v309
        %319 = vmatprep.subr.bf16.mxu0 0
        %320 = vmatpush1.bf16.msra.mxu0 %v310
        %321 = vmatprep.subr.bf16.mxu0 0
        %322 = vmatpush1.bf16.msra.mxu0 %v311
        %323 = vmatprep.subr.bf16.mxu0 0
        %324 = vmatpush1.bf16.msra.mxu0 %v312
        %325 = vmatprep.subr.bf16.mxu0 0
        %326 = vmatpush1.bf16.msra.mxu0 %v313
        %327 = vmatprep.subr.bf16.mxu0 0
        %328 = vmatpush1.bf16.msra.mxu0 %v314
        %329 = vmatprep.subr.bf16.mxu0 0
        %330 = vmatpush1.bf16.msra.mxu0 %v315
        %331 = vmatprep.subr.bf16.mxu0 0
        %332 = vmatpush1.bf16.msra.mxu0 %v316
        %333 = vmatprep.subr.bf16.mxu0 0
        %334 = vmatpush1.bf16.msra.mxu0 0
        %335 = vmatprep.subr.bf16.mxu0 0
        %336 = vmatpush1.bf16.msra.mxu0 0
        %337 = vmatprep.subr.bf16.mxu0 0
        %338 = vmatpush1.bf16.msra.mxu0 0
        %339 = vmatprep.subr.bf16.mxu0 0
        %340 = vmatpush1.bf16.msra.mxu0 0
        %341 = vmatprep.subr.bf16.mxu0 0
        %342 = vmatpush1.bf16.msra.mxu0 0
        %343 = vmatprep.subr.bf16.mxu0 0
        %344 = vmatpush1.bf16.msra.mxu0 0
        %345 = vmatprep.subr.bf16.mxu0 0
        %346 = vmatpush1.bf16.msra.mxu0 0
        %347 = vmatprep.subr.bf16.mxu0 0
        %348 = vmatpush1.bf16.msra.mxu0 0
        %349 = vmatprep.mubr.bf16.mxu0 0
        %350 = vmatmul.mubr.bf16.gmra.mrb[0].mxu0 %v292
        %v351 = vpop.f32.mrb[0].mxu0
        %v352 = vadd.f32 0.0, %v351
        %v353 = vpop.f32.mrb[0].mxu0
        %v354 = vpop.f32.mrb[0].mxu0
        %v355 = vadd.f32 0.0, %v354
        %v356 = vpop.f32.mrb[0].mxu0
        %357 = vdwg.mxu0
        %v358 = vld [vmem:[%s241] sm:$0x1]
        %v360 = vlaneseq
        %v361 = vshrl.u32 %v360, 7
        %v362 = vsub.s32 0, %v361
        %v363 = vrot.slane %v358, %v362
        %v365 = vmul.f32 %v352, %v363
        %v366 = vmul.f32 %v355, %v363
        %367 = vst [vmem:[%s272] sm:$0xff] %v365
        %368 = vst [vmem:[%s272 + $0x8] sm:$0xff] %v366
        %s369 = sand.u32 %s123, 1
        %s370 = scalar_lea.sflag [#allocation4], %s369
        %s371 = sand.u32 %s123, 1
        %s372 = smul.addr %s371, 16
        %s373 = scalar_lea.vmem [#allocation8], %s372
        // Predicated region
        $region45: #{tpu_custom_call.1} parent=31 // pred_check
          %p374 = pneg %p133
        $region46: #{tpu_custom_call.1} parent=31 // pred_check_branch
          %376 = sbr.rel (%p374) target = $region48
        $region47: #{tpu_custom_call.1} parent=31 // pred_region
          %s377 = smul.u32 2, %s28
          %s379 = ssub.s32 256, 256
          %380 = vsyncadd %s370, %s379
          %s381 = smul.addr %s377, 2
          %s382 = sadd.s32 %s27, %s381
          %s383 = smul.addr %s382, 128
          %s384 = scalar_lea.hbm %s3, %s383
          %s385 = sshll.u32 %s373, 4
          %s386 = int_to_ptr.vmem [resolvable:$true] %s385
          %391 = dma.vmem_to_hbm [thread:$0]  %s386, 256, %s384, %s370, 128, 256, 8
        $region48: #{tpu_custom_call.1} parent=31 // pred_fallthru
          _
      $region32: #{tpu_custom_call.1} parent=5 // pred_fallthru
        _
      %p392 = scmp.le.s32.totalorder 2, %s18
      // Predicated region
      $region49: #{tpu_custom_call.1} parent=5 // pred_check
        %p393 = pneg %p392
      $region50: #{tpu_custom_call.1} parent=5 // pred_check_branch
        %395 = sbr.rel (%p393) target = $region52
      $region51: #{tpu_custom_call.1} parent=5 // pred_region
        %s396 = ssub.s32 %s18, 2
        // Predicated region
        $region53: #{tpu_custom_call.1} parent=51 // pred_check
          %p397 = pneg %p139
        $region54: #{tpu_custom_call.1} parent=51 // pred_check_branch
          %399 = sbr.rel (%p397) target = $region56
        $region55: #{tpu_custom_call.1} parent=51 // pred_region
          %s400 = sand.u32 %s124, 1
          %s401 = scalar_lea.sflag [#allocation4], %s400
          %s402 = sand.u32 %s124, 1
          %s403 = smul.addr %s402, 16
          %s404 = scalar_lea.vmem [#allocation8], %s403
          %405 = dma.done %s401, 256
        $region56: #{tpu_custom_call.1} parent=51 // pred_fallthru
          _
      $region52: #{tpu_custom_call.1} parent=5 // pred_fallthru
        _
    $region6: #{tpu_custom_call.1} parent=1 // loop_footer
      %s22 = sadd.s32 1, %s18
    $region7: #{tpu_custom_call.1} parent=1 // loop_footer_branch
      %17 = sbr.rel target = $region3
    $region8: #{tpu_custom_call.1} parent=1 // loop_exit
      _
    %406 = vsyncpa [#allocation3], 1
    %s407 = scalar_lea.sflag [#allocation3], 1
    %408 = vsyncpa %s407, 1
    %409 = vsyncpa [#allocation6], 1
    %s410 = scalar_lea.sflag [#allocation6], 1
    %411 = vsyncpa %s410, 1
    %412 = vsyncpa [#allocation4], 1
    %s413 = scalar_lea.sflag [#allocation4], 1
    %414 = vsyncpa %s413, 1

</llo_original>
